<compile_context>
chip_gen: v7x
topology: tpu7x:2x2x1
jax: 0.10.0
libtpu: 0.0.40
codegen_flags: <defaults>
</compile_context>

<pallas_src>
import functools

import jax
import jax.numpy as jnp
from jax.experimental import pallas as pl
from jax.experimental.pallas import tpu as pltpu


def _round_up(v, m):
    return ((v + m - 1) // m) * m


def _pad2d(a, rows, cols):
    return jnp.pad(a, ((0, rows - a.shape[0]), (0, cols - a.shape[1])))


# ----------------------------- Pallas kernel ------------------------------ #
def _mlp_kernel(x_ref, w1_ref, b1_ref, w2_ref, b2_ref, w3_ref, b3_ref, o_ref):
    """fc1+relu -> fc2+relu -> fc3 on one batch tile (all operands in VMEM)."""
    # In-kernel downcast of x: f32 block straight from HBM -> bf16 for the MXU.
    x = x_ref[...].astype(jnp.bfloat16)                              # (TB, Din)
    h1 = jnp.dot(x, w1_ref[...], preferred_element_type=jnp.float32) + b1_ref[...]
    h1 = jnp.maximum(h1, 0.0).astype(jnp.bfloat16)                   # (TB, Hp)
    h2 = jnp.dot(h1, w2_ref[...], preferred_element_type=jnp.float32) + b2_ref[...]
    h2 = jnp.maximum(h2, 0.0).astype(jnp.bfloat16)                   # (TB, Hp)
    out = jnp.dot(h2, w3_ref[...], preferred_element_type=jnp.float32) + b3_ref[...]
    o_ref[...] = out.astype(o_ref.dtype)                             # (TB, Dout) f32


# ------------------------ one-time parameter prepare ----------------------- #
def prepare_ffindiv_params(params, *, input_size, hidden_size, output_size):
    """Pad + cast the weights once, outside the per-call forward path.

    Weights are stored [in_features, out_features] (transposed vs torch Linear),
    zero-padded on the hidden axes to 128 lanes, and cast to bf16.  Biases stay
    f32.  Zero padding keeps results exact.
    """
    w1, b1, w2, b2, w3, b3 = params
    hp = _round_up(max(hidden_size, 128), 128)
    w1p = _pad2d(w1.astype(jnp.float32), input_size, hp).astype(jnp.bfloat16)
    b1p = _pad2d(b1.reshape(1, -1).astype(jnp.float32), 1, hp)
    w2p = _pad2d(w2.astype(jnp.float32), hp, hp).astype(jnp.bfloat16)
    b2p = _pad2d(b2.reshape(1, -1).astype(jnp.float32), 1, hp)
    w3p = _pad2d(w3.astype(jnp.float32), hp, output_size).astype(jnp.bfloat16)
    b3p = b3.reshape(1, -1).astype(jnp.float32)
    return (w1p, b1p, w2p, b2p, w3p, b3p)


# ------------------------------- tile choice -------------------------------- #
def _pick_batch_tile(B):
    """Batch tile size.

    - B <= 256: one tile equal to the full batch (block == array dim, always
      legal; splitting this little work across cores buys nothing).
    - B >  256: >= 2 balanced tiles (multiple of 8) so v7x's two TensorCores
      both get work, capped at 8192 rows to amortize per-step overhead while
      keeping double-buffered x/out VMEM ~1 MiB.
    """
    if B <= 256:
        return B
    tb = _round_up(-(-B // 2), 8)
    return min(tb, 8192)


# --------------------------------- forward --------------------------------- #
@functools.partial(jax.jit, static_argnames=("input_size", "output_size"))
def ffindiv_forward(x, padded_params, *, input_size, output_size):
    """Forward pass equivalent to FFIndiv.forward (f32 in / f32 out)."""
    w1p, b1p, w2p, b2p, w3p, b3p = padded_params
    din, hp = w1p.shape
    dout = w3p.shape[1]

    # x.view(-1, input_size): pure metadata reshape, no HBM pass, no cast here.
    x2 = x.reshape(-1, input_size)
    B = x2.shape[0]

    tb = _pick_batch_tile(B)
    n_tiles = -(-B // tb)   # ragged last tile handled by Pallas partial blocks

    flops = 2 * B * (din * hp + hp * hp + hp * dout)
    bytes_accessed = (
        B * din * 4                                    # x (f32, read once)
        + w1p.size * 2 + w2p.size * 2 + w3p.size * 2   # bf16 weights
        + (b1p.size + b2p.size + b3p.size) * 4         # f32 biases
        + B * dout * 4                                 # f32 output
    )

    out = pl.pallas_call(
        _mlp_kernel,
        out_shape=jax.ShapeDtypeStruct((B, dout), jnp.float32),
        grid=(n_tiles,),
        in_specs=[
            pl.BlockSpec((tb, din), lambda i: (i, 0)),    # x: batch-tiled, f32
            pl.BlockSpec((din, hp), lambda i: (0, 0)),    # w1: VMEM-resident
            pl.BlockSpec((1, hp), lambda i: (0, 0)),      # b1
            pl.BlockSpec((hp, hp), lambda i: (0, 0)),     # w2
            pl.BlockSpec((1, hp), lambda i: (0, 0)),      # b2
            pl.BlockSpec((hp, dout), lambda i: (0, 0)),   # w3
            pl.BlockSpec((1, dout), lambda i: (0, 0)),    # b3
        ],
        # Narrow (dout==full-array) output block; see header note on lane-dense.
        out_specs=pl.BlockSpec((tb, dout), lambda i: (i, 0)),
        compiler_params=pltpu.CompilerParams(dimension_semantics=("parallel",)),
        cost_estimate=pl.CostEstimate(
            flops=flops, transcendentals=0, bytes_accessed=bytes_accessed
        ),
    )(x2, w1p, b1p, w2p, b2p, w3p, b3p)

    return out


# --------------------------- parameter creation ---------------------------- #
def _xavier_uniform(key, fan_in, fan_out):
    # torch.nn.init.xavier_uniform_ on a Linear weight (out, in): bound =
    # sqrt(6/(fan_in+fan_out)).  Stored transposed here: (in, out).
    bound = (6.0 / (fan_in + fan_out)) ** 0.5
    return jax.random.uniform(
        key, (fan_in, fan_out), dtype=jnp.float32, minval=-bound, maxval=bound
    )


def init_ffindiv_params(key, input_size, hidden_size, output_size):
    k1, k2, k3 = jax.random.split(key, 3)
    w1 = _xavier_uniform(k1, input_size, hidden_size)
    b1 = jnp.zeros((hidden_size,), jnp.float32)
    w2 = _xavier_uniform(k2, hidden_size, hidden_size)
    b2 = jnp.zeros((hidden_size,), jnp.float32)
    w3 = _xavier_uniform(k3, hidden_size, output_size)
    b3 = jnp.zeros((output_size,), jnp.float32)
    return (w1, b1, w2, b2, w3, b3)


def _reference_outputs(params, x, input_size):
    """bf16-matched and pure-f32 references for correctness checks."""
    w1, b1, w2, b2, w3, b3 = params
    xr = x.reshape(-1, input_size)
    # bf16-matched (same arithmetic as the kernel) -> tight check.
    hb = jnp.dot(xr.astype(jnp.bfloat16), w1.astype(jnp.bfloat16),
                 preferred_element_type=jnp.float32) + b1
    hb = jnp.maximum(hb, 0.0).astype(jnp.bfloat16)
    hb = jnp.dot(hb, w2.astype(jnp.bfloat16),
                 preferred_element_type=jnp.float32) + b2
    hb = jnp.maximum(hb, 0.0).astype(jnp.bfloat16)
    ref_bf16 = jnp.dot(hb, w3.astype(jnp.bfloat16),
                       preferred_element_type=jnp.float32) + b3
    # pure-f32 torch semantics -> loose check (bf16 rounding only).
    ref_f32 = jnp.maximum(xr @ w1 + b1, 0.0)
    ref_f32 = jnp.maximum(ref_f32 @ w2 + b2, 0.0)
    ref_f32 = ref_f32 @ w3 + b3
    return ref_bf16, ref_f32


# ----------------------------------- main ----------------------------------- #
if __name__ == "__main__":
    # obs_space = ('Box', (4, 4)) -> input_size = 16
    # action_space = ('Discrete', 6) -> output_size = 6, hidden_size = 32
    input_size = 16
    hidden_size = 32
    output_size = 6

    key = jax.random.PRNGKey(0)
    kp, kx1, kx2 = jax.random.split(key, 3)
    params = init_ffindiv_params(kp, input_size, hidden_size, output_size)
    padded_params = prepare_ffindiv_params(
        params, input_size=input_size, hidden_size=hidden_size,
        output_size=output_size,
    )

    # Check 1: tiny batch (single tile path).  Obs shaped like the unflattened
    # obs space: (batch, 4, 4).
    x_small = jax.random.normal(kx1, (2, 4, 4), dtype=jnp.float32)
    out_small = ffindiv_forward(
        x_small, padded_params, input_size=input_size, output_size=output_size
    )
    out_small = jax.block_until_ready(out_small)
    assert out_small.shape == (2, output_size), out_small.shape
    ref_bf16, ref_f32 = _reference_outputs(params, x_small, input_size)
    assert jnp.allclose(out_small, ref_bf16, atol=1e-3, rtol=1e-3), \
        "mismatch vs bf16 ref (small batch)"
    assert jnp.allclose(out_small, ref_f32, atol=1e-1, rtol=1e-1), \
        "mismatch vs f32 ref (small batch)"

    # Check 2: medium batch exercising the 2-tile grid with a ragged last tile
    # (B=300 -> tb=152, grid=2, last tile covers only 148 live rows).
    x_med = jax.random.normal(kx2, (300, 4, 4), dtype=jnp.float32)
    out_med = ffindiv_forward(
        x_med, padded_params, input_size=input_size, output_size=output_size
    )
    out_med = jax.block_until_ready(out_med)
    assert out_med.shape == (300, output_size), out_med.shape
    ref_bf16_m, ref_f32_m = _reference_outputs(params, x_med, input_size)
    assert jnp.allclose(out_med, ref_bf16_m, atol=1e-3, rtol=1e-3), \
        "mismatch vs bf16 ref (ragged batch)"
    assert jnp.allclose(out_med, ref_f32_m, atol=1e-1, rtol=1e-1), \
        "mismatch vs f32 ref (ragged batch)"

    print("KERNEL_OK")
</pallas_src>

<mosaic_0001>
module attributes {stable_mosaic.version = 11 : i64} {
  func.func @_mlp_kernel(%arg0: i32, %arg1: memref<2x16xf32, #tpu.memory_space<vmem>>, %arg2: memref<16x128xbf16, #tpu.memory_space<vmem>>, %arg3: memref<1x128xf32, #tpu.memory_space<vmem>>, %arg4: memref<128x128xbf16, #tpu.memory_space<vmem>>, %arg5: memref<1x128xf32, #tpu.memory_space<vmem>>, %arg6: memref<128x6xbf16, #tpu.memory_space<vmem>>, %arg7: memref<1x6xf32, #tpu.memory_space<vmem>>, %arg8: memref<2x6xf32, #tpu.memory_space<vmem>>) attributes {dimension_semantics = [#tpu.dimension_semantics<parallel>], iteration_bounds = array<i64: 1>, scalar_prefetch = 0 : i64, scratch_operands = 0 : i64, tpu.core_type = #tpu.core_type<tc>, window_params = [{transform_indices = @transform_0, window_bounds = array<i64: 2, 16>}, {pipeline_mode = #tpu.pipeline_mode<synchronous>, transform_indices = @transform_1, window_bounds = array<i64: 16, 128>}, {pipeline_mode = #tpu.pipeline_mode<synchronous>, transform_indices = @transform_2, window_bounds = array<i64: 1, 128>}, {pipeline_mode = #tpu.pipeline_mode<synchronous>, transform_indices = @transform_3, window_bounds = array<i64: 128, 128>}, {pipeline_mode = #tpu.pipeline_mode<synchronous>, transform_indices = @transform_4, window_bounds = array<i64: 1, 128>}, {pipeline_mode = #tpu.pipeline_mode<synchronous>, transform_indices = @transform_5, window_bounds = array<i64: 128, 6>}, {pipeline_mode = #tpu.pipeline_mode<synchronous>, transform_indices = @transform_6, window_bounds = array<i64: 1, 6>}, {transform_indices = @transform_7, window_bounds = array<i64: 2, 6>}]} {
    %c0 = arith.constant 0 : index
    %c0_0 = arith.constant 0 : index
    %0 = vector.load %arg1[%c0, %c0_0] : memref<2x16xf32, #tpu.memory_space<vmem>>, vector<2x16xf32>
    %1 = arith.truncf %0 : vector<2x16xf32> to vector<2x16xbf16>
    %c0_1 = arith.constant 0 : index
    %c0_2 = arith.constant 0 : index
    %2 = vector.load %arg2[%c0_1, %c0_2] : memref<16x128xbf16, #tpu.memory_space<vmem>>, vector<16x128xbf16>
    %cst = arith.constant dense<0.000000e+00> : vector<2x128xf32>
    %3 = tpu.matmul %1, %2, %cst {dimension_numbers = #tpu.dot_dimension_numbers<[1], [0], [0], [1], [0, 0, 1, 1], [], []>} : vector<2x16xbf16>, vector<16x128xbf16>, vector<2x128xf32> -> vector<2x128xf32>
    %c0_3 = arith.constant 0 : index
    %c0_4 = arith.constant 0 : index
    %4 = vector.load %arg3[%c0_3, %c0_4] : memref<1x128xf32, #tpu.memory_space<vmem>>, vector<1x128xf32>
    %5 = vector.broadcast %4 : vector<1x128xf32> to vector<2x128xf32>
    %6 = arith.addf %3, %5 : vector<2x128xf32>
    %cst_5 = arith.constant 0.000000e+00 : f32
    %7 = vector.broadcast %cst_5 : f32 to vector<2x128xf32>
    %8 = arith.maximumf %6, %7 : vector<2x128xf32>
    %9 = arith.truncf %8 : vector<2x128xf32> to vector<2x128xbf16>
    %c0_6 = arith.constant 0 : index
    %c0_7 = arith.constant 0 : index
    %10 = vector.load %arg4[%c0_6, %c0_7] : memref<128x128xbf16, #tpu.memory_space<vmem>>, vector<128x128xbf16>
    %cst_8 = arith.constant dense<0.000000e+00> : vector<2x128xf32>
    %11 = tpu.matmul %9, %10, %cst_8 {dimension_numbers = #tpu.dot_dimension_numbers<[1], [0], [0], [1], [0, 0, 1, 1], [], []>} : vector<2x128xbf16>, vector<128x128xbf16>, vector<2x128xf32> -> vector<2x128xf32>
    %c0_9 = arith.constant 0 : index
    %c0_10 = arith.constant 0 : index
    %12 = vector.load %arg5[%c0_9, %c0_10] : memref<1x128xf32, #tpu.memory_space<vmem>>, vector<1x128xf32>
    %13 = vector.broadcast %12 : vector<1x128xf32> to vector<2x128xf32>
    %14 = arith.addf %11, %13 : vector<2x128xf32>
    %cst_11 = arith.constant 0.000000e+00 : f32
    %15 = vector.broadcast %cst_11 : f32 to vector<2x128xf32>
    %16 = arith.maximumf %14, %15 : vector<2x128xf32>
    %17 = arith.truncf %16 : vector<2x128xf32> to vector<2x128xbf16>
    %c0_12 = arith.constant 0 : index
    %c0_13 = arith.constant 0 : index
    %18 = vector.load %arg6[%c0_12, %c0_13] : memref<128x6xbf16, #tpu.memory_space<vmem>>, vector<128x6xbf16>
    %cst_14 = arith.constant dense<0.000000e+00> : vector<2x6xf32>
    %19 = tpu.matmul %17, %18, %cst_14 {dimension_numbers = #tpu.dot_dimension_numbers<[1], [0], [0], [1], [0, 0, 1, 1], [], []>} : vector<2x128xbf16>, vector<128x6xbf16>, vector<2x6xf32> -> vector<2x6xf32>
    %c0_15 = arith.constant 0 : index
    %c0_16 = arith.constant 0 : index
    %20 = vector.load %arg7[%c0_15, %c0_16] : memref<1x6xf32, #tpu.memory_space<vmem>>, vector<1x6xf32>
    %21 = vector.broadcast %20 : vector<1x6xf32> to vector<2x6xf32>
    %22 = arith.addf %19, %21 : vector<2x6xf32>
    %c0_17 = arith.constant 0 : index
    %c0_18 = arith.constant 0 : index
    %23 = vector.load %arg8[%c0_17, %c0_18] : memref<2x6xf32, #tpu.memory_space<vmem>>, vector<2x6xf32>
    tpu.vector_store %arg8[%c0_17, %c0_18], %22 {strides = array<i32>} : memref<2x6xf32, #tpu.memory_space<vmem>>, vector<2x6xf32>,
    return
  }
  func.func @transform_0(%arg0: i32) -> (i32, i32) {
    %c0_i32 = arith.constant 0 : i32
    %c0_i32_0 = arith.constant 0 : i32
    return %arg0, %c0_i32 : i32, i32
  }
  func.func @transform_1(%arg0: i32) -> (i32, i32) {
    %c0_i32 = arith.constant 0 : i32
    %c0_i32_0 = arith.constant 0 : i32
    %c0_i32_1 = arith.constant 0 : i32
    return %c0_i32, %c0_i32_0 : i32, i32
  }
  func.func @transform_2(%arg0: i32) -> (i32, i32) {
    %c0_i32 = arith.constant 0 : i32
    %c0_i32_0 = arith.constant 0 : i32
    %c0_i32_1 = arith.constant 0 : i32
    return %c0_i32, %c0_i32_0 : i32, i32
  }
  func.func @transform_3(%arg0: i32) -> (i32, i32) {
    %c0_i32 = arith.constant 0 : i32
    %c0_i32_0 = arith.constant 0 : i32
    %c0_i32_1 = arith.constant 0 : i32
    return %c0_i32, %c0_i32_0 : i32, i32
  }
  func.func @transform_4(%arg0: i32) -> (i32, i32) {
    %c0_i32 = arith.constant 0 : i32
    %c0_i32_0 = arith.constant 0 : i32
    %c0_i32_1 = arith.constant 0 : i32
    return %c0_i32, %c0_i32_0 : i32, i32
  }
  func.func @transform_5(%arg0: i32) -> (i32, i32) {
    %c0_i32 = arith.constant 0 : i32
    %c0_i32_0 = arith.constant 0 : i32
    %c0_i32_1 = arith.constant 0 : i32
    return %c0_i32, %c0_i32_0 : i32, i32
  }
  func.func @transform_6(%arg0: i32) -> (i32, i32) {
    %c0_i32 = arith.constant 0 : i32
    %c0_i32_0 = arith.constant 0 : i32
    %c0_i32_1 = arith.constant 0 : i32
    return %c0_i32, %c0_i32_0 : i32, i32
  }
  func.func @transform_7(%arg0: i32) -> (i32, i32) {
    %c0_i32 = arith.constant 0 : i32
    %c0_i32_0 = arith.constant 0 : i32
    return %arg0, %c0_i32 : i32, i32
  }
}

</mosaic_0001>

<llo_original>
// kernel: ffindiv_forward.1
$region0: #{ffindiv_forward.1}
  #allocation0 [shape = 'u32[]', space=smem, size = 0x4, offset = 0x4, fixed_abs, tag = 'smem constant byte address 0x4 - core index']
  #allocation1 [shape = 'u32[144,128]{1,0:T(1,128)}', space=vmem, size = 0x12000, scoped, tag = 'internal scratch']
  %s0 = inlined_call_operand.vmem [shape: f32[2,16], index: 0, kind: input, shape index: {}]
  %s1 = inlined_call_operand.vmem [shape: bf16[16,128], index: 1, kind: input, shape index: {}]
  %s2 = inlined_call_operand.vmem [shape: f32[1,128], index: 2, kind: input, shape index: {}]
  %s3 = inlined_call_operand.vmem [shape: bf16[128,128], index: 3, kind: input, shape index: {}]
  %s4 = inlined_call_operand.vmem [shape: f32[1,128], index: 4, kind: input, shape index: {}]
  %s5 = inlined_call_operand.vmem [shape: bf16[128,6], index: 5, kind: input, shape index: {}]
  %s6 = inlined_call_operand.vmem [shape: f32[1,6], index: 6, kind: input, shape index: {}]
  %s7 = inlined_call_operand.hbm [shape: f32[2,6], index: 7, kind: output, shape index: {}]
  %s8 = sld [smem:[#allocation0]]
  $region38: #{ffindiv_forward.1} parent=0
    _
  %s10 = ssub.s32 1, %s8
  %s11 = scalar_select 0, %s10, %s8
  $region1: #{ffindiv_forward.1} parent=0
    #allocation2 [shape = 'u8[1024]{0}', space=vmem, size = 0x400, scoped, tag = 'output window, operand 0, single buffered']
    #allocation3 [shape = 's32[1]{0}', space=sflag, size = 0x4, scoped, tag = 'scoped memory for ffindiv_forward.1']
    %12 = vsyncpa [#allocation3], 0
    // Predicated region
    $region2: #{ffindiv_forward.1} parent=1 // pred_check
      _
    $region3: #{ffindiv_forward.1} parent=1 // pred_check_branch
      %14 = sbr.rel (0) target = $region5
    $region4: #{ffindiv_forward.1} parent=1 // pred_region
      _
    $region5: #{ffindiv_forward.1} parent=1 // pred_fallthru
      _
    // Predicated region
    $region6: #{ffindiv_forward.1} parent=1 // pred_check
      _
    $region7: #{ffindiv_forward.1} parent=1 // pred_check_branch
      %16 = sbr.rel (0) target = $region9
    $region8: #{ffindiv_forward.1} parent=1 // pred_region
      _
    $region9: #{ffindiv_forward.1} parent=1 // pred_fallthru
      _
    // Predicated region
    $region10: #{ffindiv_forward.1} parent=1 // pred_check
      _
    $region11: #{ffindiv_forward.1} parent=1 // pred_check_branch
      %18 = sbr.rel (0) target = $region13
    $region12: #{ffindiv_forward.1} parent=1 // pred_region
      _
    $region13: #{ffindiv_forward.1} parent=1 // pred_fallthru
      _
    // Predicated region
    $region14: #{ffindiv_forward.1} parent=1 // pred_check
      _
    $region15: #{ffindiv_forward.1} parent=1 // pred_check_branch
      %20 = sbr.rel (0) target = $region17
    $region16: #{ffindiv_forward.1} parent=1 // pred_region
      _
    $region17: #{ffindiv_forward.1} parent=1 // pred_fallthru
      _
    // Predicated region
    $region18: #{ffindiv_forward.1} parent=1 // pred_check
      _
    $region19: #{ffindiv_forward.1} parent=1 // pred_check_branch
      %22 = sbr.rel (0) target = $region21
    $region20: #{ffindiv_forward.1} parent=1 // pred_region
      _
    $region21: #{ffindiv_forward.1} parent=1 // pred_fallthru
      _
    // Predicated region
    $region22: #{ffindiv_forward.1} parent=1 // pred_check
      _
    $region23: #{ffindiv_forward.1} parent=1 // pred_check_branch
      %24 = sbr.rel (0) target = $region25
    $region24: #{ffindiv_forward.1} parent=1 // pred_region
      _
    $region25: #{ffindiv_forward.1} parent=1 // pred_fallthru
      _
    // Predicated region
    $region26: #{ffindiv_forward.1} parent=1 // pred_check
      _
    $region27: #{ffindiv_forward.1} parent=1 // pred_check_branch
      %26 = sbr.rel (0) target = $region29
    $region28: #{ffindiv_forward.1} parent=1 // pred_region
      _
    $region29: #{ffindiv_forward.1} parent=1 // pred_fallthru
      _
    %v28 = vld [vmem:[%s0] sm:$0x3]
    %v29 = vpack.c.bf16 %v28, %v28
    %v30 = vld [vmem:[%s1] sm:$0xf]
    %v31 = vld [vmem:[%s1 + $0x4] sm:$0xf]
    %v32 = vld [vmem:[%s2] sm:$0x1]
    %v34 = vlaneseq
    %v35 = vshrl.u32 %v34, 7
    %v36 = vsub.s32 0, %v35
    %v37 = vrot.slane %v32, %v36
    %v41 = vunpack.c.l.b16 %v30
    %v42 = vunpack.c.l.b16 %v31
    %v43 = vpack.c.b16 %v42, %v41
    %vm45 = vcmask 130048
    %v47 = vsel %vm45, %v29, 0
    %49 = vmatprep.subr.bf16.mxu0 0
    %50 = vmatpush1.bf16.msra.mxu0 %v43
    %51 = vmatprep.subr.bf16.mxu0 0
    %52 = vmatpush1.bf16.msra.mxu0 0
    %53 = vmatprep.subr.bf16.mxu0 0
    %54 = vmatpush1.bf16.msra.mxu0 0
    %55 = vmatprep.subr.bf16.mxu0 0
    %56 = vmatpush1.bf16.msra.mxu0 0
    %57 = vmatprep.subr.bf16.mxu0 0
    %58 = vmatpush1.bf16.msra.mxu0 0
    %59 = vmatprep.subr.bf16.mxu0 0
    %60 = vmatpush1.bf16.msra.mxu0 0
    %61 = vmatprep.subr.bf16.mxu0 0
    %62 = vmatpush1.bf16.msra.mxu0 0
    %63 = vmatprep.subr.bf16.mxu0 0
    %64 = vmatpush1.bf16.msra.mxu0 0
    %65 = vmatprep.subr.bf16.mxu0 0
    %66 = vmatpush1.bf16.msra.mxu0 0
    %67 = vmatprep.subr.bf16.mxu0 0
    %68 = vmatpush1.bf16.msra.mxu0 0
    %69 = vmatprep.subr.bf16.mxu0 0
    %70 = vmatpush1.bf16.msra.mxu0 0
    %71 = vmatprep.subr.bf16.mxu0 0
    %72 = vmatpush1.bf16.msra.mxu0 0
    %73 = vmatprep.subr.bf16.mxu0 0
    %74 = vmatpush1.bf16.msra.mxu0 0
    %75 = vmatprep.subr.bf16.mxu0 0
    %76 = vmatpush1.bf16.msra.mxu0 0
    %77 = vmatprep.subr.bf16.mxu0 0
    %78 = vmatpush1.bf16.msra.mxu0 0
    %79 = vmatprep.subr.bf16.mxu0 0
    %80 = vmatpush1.bf16.msra.mxu0 0
    %81 = vmatprep.mubr.bf16.mxu0 0
    %82 = vmatmul.mubr.bf16.gmra.mrb[0].mxu0 %v47
    %v83 = vpop.f32.mrb[0].mxu0
    %v84 = vadd.f32 %v37, %v83
    %v85 = vpop.f32.mrb[0].mxu0
    %v86 = vpop.f32.mrb[0].mxu0
    %v87 = vpop.f32.mrb[0].mxu0
    %88 = vdwg.mxu0
    %v89 = vmax.f32 %v84, 0.0
    %v90 = vpack.c.bf16 %v89, %v89
    %v91 = vld [vmem:[%s3] sm:$0xf]
    %v92 = vld [vmem:[%s3 + $0x4] sm:$0xf]
    %v93 = vld [vmem:[%s3 + $0x8] sm:$0xf]
    %v94 = vld [vmem:[%s3 + $0xc] sm:$0xf]
    %v95 = vld [vmem:[%s3 + $0x10] sm:$0xf]
    %v96 = vld [vmem:[%s3 + $0x14] sm:$0xf]
    %v97 = vld [vmem:[%s3 + $0x18] sm:$0xf]
    %v98 = vld [vmem:[%s3 + $0x1c] sm:$0xf]
    %v99 = vld [vmem:[%s3 + $0x20] sm:$0xf]
    %v100 = vld [vmem:[%s3 + $0x24] sm:$0xf]
    %v101 = vld [vmem:[%s3 + $0x28] sm:$0xf]
    %v102 = vld [vmem:[%s3 + $0x2c] sm:$0xf]
    %v103 = vld [vmem:[%s3 + $0x30] sm:$0xf]
    %v104 = vld [vmem:[%s3 + $0x34] sm:$0xf]
    %v105 = vld [vmem:[%s3 + $0x38] sm:$0xf]
    %v106 = vld [vmem:[%s3 + $0x3c] sm:$0xf]
    %v107 = vld [vmem:[%s4] sm:$0x1]
    %v109 = vlaneseq
    %v110 = vshrl.u32 %v109, 7
    %v111 = vsub.s32 0, %v110
    %v112 = vrot.slane %v107, %v111
    %v130 = vunpack.c.l.b16 %v91
    %v131 = vunpack.c.l.b16 %v92
    %v132 = vunpack.c.l.b16 %v93
    %v133 = vunpack.c.l.b16 %v94
    %v134 = vunpack.c.l.b16 %v95
    %v135 = vunpack.c.l.b16 %v96
    %v136 = vunpack.c.l.b16 %v97
    %v137 = vunpack.c.l.b16 %v98
    %v138 = vunpack.c.l.b16 %v99
    %v139 = vunpack.c.l.b16 %v100
    %v140 = vunpack.c.l.b16 %v101
    %v141 = vunpack.c.l.b16 %v102
    %v142 = vunpack.c.l.b16 %v103
    %v143 = vunpack.c.l.b16 %v104
    %v144 = vunpack.c.l.b16 %v105
    %v145 = vunpack.c.l.b16 %v106
    %v146 = vpack.c.b16 %v131, %v130
    %v147 = vpack.c.b16 %v133, %v132
    %v148 = vpack.c.b16 %v135, %v134
    %v149 = vpack.c.b16 %v137, %v136
    %v150 = vpack.c.b16 %v139, %v138
    %v151 = vpack.c.b16 %v141, %v140
    %v152 = vpack.c.b16 %v143, %v142
    %v153 = vpack.c.b16 %v145, %v144
    %162 = vmatprep.subr.bf16.mxu0 0
    %163 = vmatpush1.bf16.msra.mxu0 %v146
    %164 = vmatprep.subr.bf16.mxu0 0
    %165 = vmatpush1.bf16.msra.mxu0 %v147
    %166 = vmatprep.subr.bf16.mxu0 0
    %167 = vmatpush1.bf16.msra.mxu0 %v148
    %168 = vmatprep.subr.bf16.mxu0 0
    %169 = vmatpush1.bf16.msra.mxu0 %v149
    %170 = vmatprep.subr.bf16.mxu0 0
    %171 = vmatpush1.bf16.msra.mxu0 %v150
    %172 = vmatprep.subr.bf16.mxu0 0
    %173 = vmatpush1.bf16.msra.mxu0 %v151
    %174 = vmatprep.subr.bf16.mxu0 0
    %175 = vmatpush1.bf16.msra.mxu0 %v152
    %176 = vmatprep.subr.bf16.mxu0 0
    %177 = vmatpush1.bf16.msra.mxu0 %v153
    %178 = vmatprep.subr.bf16.mxu0 0
    %179 = vmatpush1.bf16.msra.mxu0 0
    %180 = vmatprep.subr.bf16.mxu0 0
    %181 = vmatpush1.bf16.msra.mxu0 0
    %182 = vmatprep.subr.bf16.mxu0 0
    %183 = vmatpush1.bf16.msra.mxu0 0
    %184 = vmatprep.subr.bf16.mxu0 0
    %185 = vmatpush1.bf16.msra.mxu0 0
    %186 = vmatprep.subr.bf16.mxu0 0
    %187 = vmatpush1.bf16.msra.mxu0 0
    %188 = vmatprep.subr.bf16.mxu0 0
    %189 = vmatpush1.bf16.msra.mxu0 0
    %190 = vmatprep.subr.bf16.mxu0 0
    %191 = vmatpush1.bf16.msra.mxu0 0
    %192 = vmatprep.subr.bf16.mxu0 0
    %193 = vmatpush1.bf16.msra.mxu0 0
    %194 = vmatprep.mubr.bf16.mxu0 0
    %195 = vmatmul.mubr.bf16.gmra.mrb[0].mxu0 %v90
    %v196 = vpop.f32.mrb[0].mxu0
    %v197 = vadd.f32 %v112, %v196
    %v198 = vpop.f32.mrb[0].mxu0
    %v199 = vpop.f32.mrb[0].mxu0
    %v200 = vpop.f32.mrb[0].mxu0
    %201 = vdwg.mxu0
    %v202 = vmax.f32 %v197, 0.0
    %v203 = vpack.c.bf16 %v202, %v202
    %v204 = vld [vmem:[%s5] sm:$0xf]
    %v205 = vld [vmem:[%s5 + $0x4] sm:$0xf]
    %v206 = vld [vmem:[%s5 + $0x8] sm:$0xf]
    %v207 = vld [vmem:[%s5 + $0xc] sm:$0xf]
    %v208 = vld [vmem:[%s5 + $0x10] sm:$0xf]
    %v209 = vld [vmem:[%s5 + $0x14] sm:$0xf]
    %v210 = vld [vmem:[%s5 + $0x18] sm:$0xf]
    %v211 = vld [vmem:[%s5 + $0x1c] sm:$0xf]
    %v212 = vld [vmem:[%s5 + $0x20] sm:$0xf]
    %v213 = vld [vmem:[%s5 + $0x24] sm:$0xf]
    %v214 = vld [vmem:[%s5 + $0x28] sm:$0xf]
    %v215 = vld [vmem:[%s5 + $0x2c] sm:$0xf]
    %v216 = vld [vmem:[%s5 + $0x30] sm:$0xf]
    %v217 = vld [vmem:[%s5 + $0x34] sm:$0xf]
    %v218 = vld [vmem:[%s5 + $0x38] sm:$0xf]
    %v219 = vld [vmem:[%s5 + $0x3c] sm:$0xf]
    %v220 = vld [vmem:[%s6] sm:$0x1]
    %v222 = vlaneseq
    %v223 = vshrl.u32 %v222, 7
    %v224 = vsub.s32 0, %v223
    %v225 = vrot.slane %v220, %v224
    %v243 = vunpack.c.l.b16 %v204
    %v244 = vunpack.c.l.b16 %v205
    %v245 = vunpack.c.l.b16 %v206
    %v246 = vunpack.c.l.b16 %v207
    %v247 = vunpack.c.l.b16 %v208
    %v248 = vunpack.c.l.b16 %v209
    %v249 = vunpack.c.l.b16 %v210
    %v250 = vunpack.c.l.b16 %v211
    %v251 = vunpack.c.l.b16 %v212
    %v252 = vunpack.c.l.b16 %v213
    %v253 = vunpack.c.l.b16 %v214
    %v254 = vunpack.c.l.b16 %v215
    %v255 = vunpack.c.l.b16 %v216
    %v256 = vunpack.c.l.b16 %v217
    %v257 = vunpack.c.l.b16 %v218
    %v258 = vunpack.c.l.b16 %v219
    %v259 = vpack.c.b16 %v244, %v243
    %v260 = vpack.c.b16 %v246, %v245
    %v261 = vpack.c.b16 %v248, %v247
    %v262 = vpack.c.b16 %v250, %v249
    %v263 = vpack.c.b16 %v252, %v251
    %v264 = vpack.c.b16 %v254, %v253
    %v265 = vpack.c.b16 %v256, %v255
    %v266 = vpack.c.b16 %v258, %v257
    %275 = vmatprep.subr.bf16.mxu0 0
    %276 = vmatpush1.bf16.msra.mxu0 %v259
    %277 = vmatprep.subr.bf16.mxu0 0
    %278 = vmatpush1.bf16.msra.mxu0 %v260
    %279 = vmatprep.subr.bf16.mxu0 0
    %280 = vmatpush1.bf16.msra.mxu0 %v261
    %281 = vmatprep.subr.bf16.mxu0 0
    %282 = vmatpush1.bf16.msra.mxu0 %v262
    %283 = vmatprep.subr.bf16.mxu0 0
    %284 = vmatpush1.bf16.msra.mxu0 %v263
    %285 = vmatprep.subr.bf16.mxu0 0
    %286 = vmatpush1.bf16.msra.mxu0 %v264
    %287 = vmatprep.subr.bf16.mxu0 0
    %288 = vmatpush1.bf16.msra.mxu0 %v265
    %289 = vmatprep.subr.bf16.mxu0 0
    %290 = vmatpush1.bf16.msra.mxu0 %v266
    %291 = vmatprep.subr.bf16.mxu0 0
    %292 = vmatpush1.bf16.msra.mxu0 0
    %293 = vmatprep.subr.bf16.mxu0 0
    %294 = vmatpush1.bf16.msra.mxu0 0
    %295 = vmatprep.subr.bf16.mxu0 0
    %296 = vmatpush1.bf16.msra.mxu0 0
    %297 = vmatprep.subr.bf16.mxu0 0
    %298 = vmatpush1.bf16.msra.mxu0 0
    %299 = vmatprep.subr.bf16.mxu0 0
    %300 = vmatpush1.bf16.msra.mxu0 0
    %301 = vmatprep.subr.bf16.mxu0 0
    %302 = vmatpush1.bf16.msra.mxu0 0
    %303 = vmatprep.subr.bf16.mxu0 0
    %304 = vmatpush1.bf16.msra.mxu0 0
    %305 = vmatprep.subr.bf16.mxu0 0
    %306 = vmatpush1.bf16.msra.mxu0 0
    %307 = vmatprep.mubr.bf16.mxu0 0
    %308 = vmatmul.mubr.bf16.gmra.mrb[0].mxu0 %v203
    %v309 = vpop.f32.mrb[0].mxu0
    %v310 = vadd.f32 %v225, %v309
    %v311 = vpop.f32.mrb[0].mxu0
    %v312 = vpop.f32.mrb[0].mxu0
    %v313 = vpop.f32.mrb[0].mxu0
    %314 = vdwg.mxu0
    %vm315 = vcmask 41984
    %316 = vst.msk [vmem:[#allocation2] sm:$0x3] %vm315, %v310
    // Predicated region
    $region30: #{ffindiv_forward.1} parent=1 // pred_check
      _
    $region31: #{ffindiv_forward.1} parent=1 // pred_check_branch
      %318 = sbr.rel (0) target = $region33
    $region32: #{ffindiv_forward.1} parent=1 // pred_region
      %s320 = ssub.s32 32, 32
      %321 = vsyncadd [#allocation3], %s320
      %s323 = sshll.u32 [#allocation2], 4
      %s324 = int_to_ptr.vmem [resolvable:$true] %s323
      %326 = dma.vmem_to_hbm [thread:$0]  %s324, 32, %s7, [#allocation3]
    $region33: #{ffindiv_forward.1} parent=1 // pred_fallthru
      _
    // Predicated region
    $region34: #{ffindiv_forward.1} parent=1 // pred_check
      _
    $region35: #{ffindiv_forward.1} parent=1 // pred_check_branch
      %328 = sbr.rel (0) target = $region37
    $region36: #{ffindiv_forward.1} parent=1 // pred_region
      %329 = dma.done [#allocation3], 32
    $region37: #{ffindiv_forward.1} parent=1 // pred_fallthru
      _
    %330 = vsyncpa [#allocation3], 1

</llo_original>
